<compile_context>
chip_gen: v6e
topology: v6e:2x2x1
jax: 0.10.0
libtpu: 0.0.40
codegen_flags: <defaults>
</compile_context>

<pallas_src>
import functools

import numpy as np

import jax
import jax.numpy as jnp
from jax import lax
from jax.experimental import pallas as pl
from jax.experimental.pallas import tpu as pltpu


# -----------------------------------------------------------------------------
# Fast path kernel: stride==1 "same" conv, lane-dense H*W layout, roll+mask taps
# -----------------------------------------------------------------------------
def _dog_same_kernel(w_ref, b_ref, m_ref, x_ref, o_ref, *, nb, c_total, cin,
                     cout, ks, dilation, h, w, pad):
    """One grid step processes `nb` batch elements, all channels.

    w_ref: VMEM (ks*ks*cin, cout, 1)   weights, tap-major (kh,kw,ci) -> (cout, 1)
    b_ref: VMEM (cout, 1)              bias
    m_ref: VMEM (ks*ks, 1, h*w)        per-tap zero-padding border mask (0/1 f32)
    x_ref: VMEM (nb, c_total, h*w)     input block, H*W flattened onto lanes
    o_ref: VMEM (nb, c_total, h*w)     output block (lane-dense stores)
    """
    hw = h * w
    # Bias-initialized accumulator template, hoisted out of every loop.
    acc0 = jnp.broadcast_to(b_ref[...], (cout, hw))

    for b in range(nb):
        x_dog = x_ref[b, 0:cin, :]                         # (cin, hw)
        acc = acc0
        for kh in range(ks):
            for kw in range(ks):
                dh = kh * dilation - pad                   # row offset into x
                dw = kw * dilation - pad                   # col offset into x
                t = kh * ks + kw
                # out[f] needs x[f + dh*w + dw]  ->  jnp.roll-style shift of -(dh*w+dw)
                shift = (-(dh * w + dw)) % hw
                shifted = pltpu.roll(x_dog, shift, axis=1) if shift else x_dog
                if dh == 0 and dw == 0:
                    tap = shifted                          # fully interior tap
                else:
                    tap = shifted * m_ref[t]               # zero the padded border
                for ci in range(cin):
                    wv = w_ref[t * cin + ci]               # (cout, 1) vector weight
                    acc = acc + tap[ci:ci + 1, :] * wv     # (1,hw)*(cout,1)->(cout,hw)
        o_ref[b, 0:cout, :] = acc
        if c_total > cout:
            # Identity channels copied inside the same block (lane-dense).
            o_ref[b, cout:c_total, :] = x_ref[b, cin:c_total, :]


# -----------------------------------------------------------------------------
# General path kernel: arbitrary stride / dilation / output size (padded scratch)
# -----------------------------------------------------------------------------
def _dog_general_kernel(w_ref, b_ref, x_ref, o_ref, xp_ref, *, c_total, cin,
                        cout, ks, stride, dilation, h_out, w_out, pad):
    """w_ref: VMEM (cin*ks*ks, cout, 1, 1); b_ref: VMEM (cout, 1, 1)
    x_ref: (1, c_total, h, w); o_ref: (1, c_total, h_out, w_out)
    xp_ref: VMEM scratch (cin, h+2*pad, w+2*pad) zero-padded DoG input."""
    h_in = x_ref.shape[2]
    w_in = x_ref.shape[3]
    hp = xp_ref.shape[1]
    wp = xp_ref.shape[2]

    # Halo-only zeroing: interior is fully overwritten right below, so don't pay for
    # a full scratch memset every step (and don't gate on program_id — each core has
    # its own scratch under megacore sharding).
    if pad > 0:
        xp_ref[:, 0:pad, :] = jnp.zeros((cin, pad, wp), jnp.float32)
        xp_ref[:, pad + h_in:hp, :] = jnp.zeros((cin, hp - pad - h_in, wp), jnp.float32)
        xp_ref[:, :, 0:pad] = jnp.zeros((cin, hp, pad), jnp.float32)
        xp_ref[:, :, pad + w_in:wp] = jnp.zeros((cin, hp, wp - pad - w_in), jnp.float32)
    xp_ref[:, pad:pad + h_in, pad:pad + w_in] = x_ref[0, 0:cin, :, :]

    # Single bias-initialized accumulator; broadcast FMA per tap.
    acc = jnp.broadcast_to(b_ref[...], (cout, h_out, w_out))
    for ci in range(cin):
        for kh in range(ks):
            for kw in range(ks):
                h0 = kh * dilation
                w0 = kw * dilation
                if stride == 1:
                    patch = xp_ref[ci, h0:h0 + h_out, w0:w0 + w_out]
                else:
                    # Strided ref load (avoids value-level dense[::s, ::s] gathers).
                    patch = xp_ref[ci,
                                   pl.ds(h0, h_out, stride=stride),
                                   pl.ds(w0, w_out, stride=stride)]
                t = (ci * ks + kh) * ks + kw
                wv = w_ref[t]                              # (cout, 1, 1)
                acc = acc + patch[None, :, :] * wv
    o_ref[0, 0:cout] = acc
    if c_total > cout:
        o_ref[0, cout:c_total] = x_ref[0, cin:c_total, :, :]


# -----------------------------------------------------------------------------
# Wrappers
# -----------------------------------------------------------------------------
def _pick_batch_block(n, bytes_per_batch, vmem_budget=8 * 1024 * 1024):
    """Largest divisor of n whose double-buffered block fits a conservative VMEM
    budget while keeping >= 2 grid steps (so both v7x TensorCores get work)."""
    best = 1
    for nb in range(1, n + 1):
        if n % nb != 0:
            continue
        if n >= 2 and n // nb < 2:
            continue
        if 4 * nb * bytes_per_batch > vmem_budget:   # ~2x double-buffer, in + out
            continue
        best = nb
    return best


def _dog_layer_same(x, kernels, bias, *, dilation, pad):
    """Lane-dense fast path: stride==1 and output spatial size == input size."""
    n, c_total, h, w = x.shape
    cout, cin, ks, _ = kernels.shape
    hw = h * w

    x_flat = x.reshape(n, c_total, hw)
    # Tap-major weight layout: row (kh*ks + kw)*cin + ci holds kernels[:, ci, kh, kw].
    w_arr = jnp.transpose(kernels, (2, 3, 1, 0)).reshape(ks * ks * cin, cout)[:, :, None]
    b_arr = bias[:, None]

    # Precomputed 0/1 border masks (compile-time constants): position (i, j) of tap
    # (kh, kw) is valid iff 0 <= i + dh < h and 0 <= j + dw < w.
    masks_np = np.zeros((ks * ks, 1, hw), np.float32)
    for kh in range(ks):
        for kw in range(ks):
            dh = kh * dilation - pad
            dw = kw * dilation - pad
            m = np.zeros((h, w), np.float32)
            m[max(0, -dh):min(h, h - dh), max(0, -dw):min(w, w - dw)] = 1.0
            masks_np[kh * ks + kw, 0, :] = m.reshape(-1)
    masks = jnp.asarray(masks_np)

    nb = _pick_batch_block(n, bytes_per_batch=8 * c_total * hw)
    grid = (n // nb,)

    kern = functools.partial(_dog_same_kernel, nb=nb, c_total=c_total, cin=cin,
                             cout=cout, ks=ks, dilation=dilation, h=h, w=w, pad=pad)
    out = pl.pallas_call(
        kern,
        out_shape=jax.ShapeDtypeStruct((n, c_total, hw), jnp.float32),
        grid=grid,
        in_specs=[
            pl.BlockSpec((ks * ks * cin, cout, 1), lambda i: (0, 0, 0)),
            pl.BlockSpec((cout, 1), lambda i: (0, 0)),
            pl.BlockSpec((ks * ks, 1, hw), lambda i: (0, 0, 0)),
            pl.BlockSpec((nb, c_total, hw), lambda i: (i, 0, 0)),
        ],
        out_specs=pl.BlockSpec((nb, c_total, hw), lambda i: (i, 0, 0)),
        compiler_params=pltpu.CompilerParams(
            dimension_semantics=("parallel",),
            vmem_limit_bytes=32 * 1024 * 1024,
        ),
    )(w_arr, b_arr, masks, x_flat)
    return out.reshape(n, c_total, h, w)


def _dog_layer_general(x, kernels, bias, *, stride, dilation, pad, h_out, w_out):
    """General path: padded VMEM scratch, NCHW blocks (one batch element per step)."""
    n, c_total, h, w = x.shape
    cout, cin, ks, _ = kernels.shape
    hp = h + 2 * pad
    wp = w + 2 * pad

    # Row (ci*ks + kh)*ks + kw holds kernels[:, ci, kh, kw] as a (cout, 1, 1) slab.
    w_arr = jnp.transpose(kernels, (1, 2, 3, 0)).reshape(cin * ks * ks, cout)[:, :, None, None]
    b_arr = bias[:, None, None]

    kern = functools.partial(_dog_general_kernel, c_total=c_total, cin=cin,
                             cout=cout, ks=ks, stride=stride, dilation=dilation,
                             h_out=h_out, w_out=w_out, pad=pad)
    out = pl.pallas_call(
        kern,
        out_shape=jax.ShapeDtypeStruct((n, c_total, h_out, w_out), jnp.float32),
        grid=(n,),
        in_specs=[
            pl.BlockSpec((cin * ks * ks, cout, 1, 1), lambda i: (0, 0, 0, 0)),
            pl.BlockSpec((cout, 1, 1), lambda i: (0, 0, 0)),
            pl.BlockSpec((1, c_total, h, w), lambda i: (i, 0, 0, 0)),
        ],
        out_specs=pl.BlockSpec((1, c_total, h_out, w_out), lambda i: (i, 0, 0, 0)),
        scratch_shapes=[pltpu.VMEM((cin, hp, wp), jnp.float32)],
        compiler_params=pltpu.CompilerParams(
            dimension_semantics=("parallel",),
            vmem_limit_bytes=32 * 1024 * 1024,
        ),
    )(w_arr, b_arr, x)
    return out


def dog_layer_pallas(x, kernels, bias, *, dog_channels, stride, padding_eff,
                     dilation):
    """Fused DoGConv2DLayer forward (conv over first dog_channels + identity rest)."""
    n, c_total, h, w = x.shape
    cout, cin, ks, _ = kernels.shape
    assert cin == dog_channels and cout == dog_channels
    assert dog_channels <= c_total

    h_out = (h + 2 * padding_eff - dilation * (ks - 1) - 1) // stride + 1
    w_out = (w + 2 * padding_eff - dilation * (ks - 1) - 1) // stride + 1
    assert h_out > 0 and w_out > 0, "conv produces empty output"
    if c_total > dog_channels:
        # torch.concat in the reference module requires matching spatial dims.
        assert (h_out, w_out) == (h, w), (
            "identity channels require DoG output spatial size == input size")

    x = x.astype(jnp.float32)
    kernels = kernels.astype(jnp.float32)
    bias = bias.astype(jnp.float32)

    if stride == 1 and (h_out, w_out) == (h, w):
        return _dog_layer_same(x, kernels, bias, dilation=dilation, pad=padding_eff)
    return _dog_layer_general(x, kernels, bias, stride=stride, dilation=dilation,
                              pad=padding_eff, h_out=h_out, w_out=w_out)


# -----------------------------------------------------------------------------
# Parameter setup + DoG kernel construction (plain-JAX glue, tiny tensors).
# -----------------------------------------------------------------------------
def init_dog_params(key, dog_channels, k):
    ks = 2 * k + 1
    oc = ic = dog_channels
    k1, k2, k3, k4 = jax.random.split(key, 4)
    sigma1 = jax.random.uniform(k1, (oc * ic, 1, 1), jnp.float32) + k / 2.0
    sigma2_scale = jax.random.uniform(k2, (oc * ic, 1, 1), jnp.float32) + k / 2.0
    total_scale = jax.random.normal(k3, (oc * ic, 1, 1), jnp.float32) * 2.0
    bias = jax.random.normal(k4, (oc,), jnp.float32)
    coords1 = jnp.arange(1, ks + 1, dtype=jnp.float32)
    xg = jnp.tile(coords1[None, :], (ks, 1))
    yg = jnp.tile(coords1[:, None], (1, ks))
    kernel_dists = (xg - (k + 1)) ** 2 + (yg - (k + 1)) ** 2  # (ks, ks)
    return dict(sigma1=sigma1, sigma2_scale=sigma2_scale,
                total_scale=total_scale, bias=bias, kernel_dists=kernel_dists)


def compute_dog_kernels(params, dog_channels, k):
    ks = 2 * k + 1
    dists = params["kernel_dists"]
    sigma1 = jnp.maximum(params["sigma1"], 0.1)
    excite = (1.0 / jnp.pi) * sigma1 * jnp.exp(-dists / sigma1)
    sigma2 = sigma1 * jnp.maximum(params["sigma2_scale"], 1.0 + 1e-4)
    inhibit = (1.0 / jnp.pi) * sigma2 * jnp.exp(-dists / jnp.maximum(sigma2, 1e-6))
    kernels = (excite - inhibit) * params["total_scale"] * -1.0  # (OC*IC, ks, ks)
    # F.normalize(dim=0): L2-normalize across the flattened OC*IC dim, eps=1e-12
    norm = jnp.sqrt(jnp.sum(kernels ** 2, axis=0, keepdims=True))
    kernels = kernels / jnp.maximum(norm, 1e-12)
    return kernels.reshape(dog_channels, dog_channels, ks, ks)


def dog_conv2d_layer_forward(x, params, *, dog_channels, k, stride, padding,
                             dilation=1):
    """DoGConv2DLayer.forward: DoG-conv the first dog_channels, identity rest."""
    kernels = compute_dog_kernels(params, dog_channels, k)
    pad_eff = 2 * padding + 1  # DoGConv2D uses padding = 2*padding + 1
    return dog_layer_pallas(x, kernels, params["bias"],
                            dog_channels=dog_channels, stride=stride,
                            padding_eff=pad_eff, dilation=dilation)


def _reference_forward(x, params, dog_channels, k, stride, padding, dilation):
    """Pure-JAX reference (XLA conv) for correctness checks."""
    kernels = compute_dog_kernels(params, dog_channels, k)
    pad_eff = 2 * padding + 1
    ref_dog = lax.conv_general_dilated(
        x[:, :dog_channels], kernels,
        window_strides=(stride, stride),
        padding=[(pad_eff, pad_eff), (pad_eff, pad_eff)],
        rhs_dilation=(dilation, dilation),
        dimension_numbers=("NCHW", "OIHW", "NCHW"),
        precision=lax.Precision.HIGHEST,
    ) + params["bias"][None, :, None, None]
    if dog_channels < x.shape[1]:
        return jnp.concatenate([ref_dog, x[:, dog_channels:]], axis=1)
    return ref_dog


# -----------------------------------------------------------------------------
# main
# -----------------------------------------------------------------------------
if __name__ == "__main__":
    root = jax.random.PRNGKey(0)
    pkey, xkey, k2a, k2b = jax.random.split(root, 4)

    # Config 1 (lane-dense fast path): stride=1, padding=0 -> pad_eff=1, k=1 -> ks=3
    # => same spatial size, with 2 identity channels passed through.
    N, C, H, W = 2, 4, 16, 16
    DOG, K, STRIDE, PADDING, DIL = 2, 1, 1, 0, 1
    params = init_dog_params(pkey, DOG, K)
    x = jax.random.normal(xkey, (N, C, H, W), jnp.float32)
    out = dog_conv2d_layer_forward(x, params, dog_channels=DOG, k=K,
                                   stride=STRIDE, padding=PADDING, dilation=DIL)
    out = jax.block_until_ready(out)
    ref = _reference_forward(x, params, DOG, K, STRIDE, PADDING, DIL)
    assert out.shape == ref.shape, (out.shape, ref.shape)
    err = float(jnp.max(jnp.abs(out - ref)))
    assert err < 1e-4, err

    # Config 2 (general padded-scratch path): all channels DoG, k=2 -> ks=5,
    # pad_eff=1 -> output spatial 14x14 != input 16x16 (no identity channels).
    DOG2, K2 = 4, 2
    params2 = init_dog_params(k2a, DOG2, K2)
    x2 = jax.random.normal(k2b, (N, C, H, W), jnp.float32)
    out2 = dog_conv2d_layer_forward(x2, params2, dog_channels=DOG2, k=K2,
                                    stride=1, padding=0, dilation=1)
    out2 = jax.block_until_ready(out2)
    ref2 = _reference_forward(x2, params2, DOG2, K2, 1, 0, 1)
    assert out2.shape == ref2.shape, (out2.shape, ref2.shape)
    err2 = float(jnp.max(jnp.abs(out2 - ref2)))
    assert err2 < 1e-4, err2

    print("KERNEL_OK")
</pallas_src>

<mosaic_0001>
module attributes {stable_mosaic.version = 11 : i64} {
  func.func @_dog_same_kernel(%arg0: i32, %arg1: memref<18x2x1xf32, #tpu.memory_space<vmem>>, %arg2: memref<2x1xf32, #tpu.memory_space<vmem>>, %arg3: memref<9x1x256xf32, #tpu.memory_space<vmem>>, %arg4: memref<1x4x256xf32, #tpu.memory_space<vmem>>, %arg5: memref<1x4x256xf32, #tpu.memory_space<vmem>>) attributes {dimension_semantics = [#tpu.dimension_semantics<parallel>], iteration_bounds = array<i64: 2>, scalar_prefetch = 0 : i64, scratch_operands = 0 : i64, tpu.core_type = #tpu.core_type<tc>, window_params = [{pipeline_mode = #tpu.pipeline_mode<synchronous>, transform_indices = @transform_0, window_bounds = array<i64: 18, 2, 1>}, {pipeline_mode = #tpu.pipeline_mode<synchronous>, transform_indices = @transform_1, window_bounds = array<i64: 2, 1>}, {pipeline_mode = #tpu.pipeline_mode<synchronous>, transform_indices = @transform_2, window_bounds = array<i64: 9, 1, 256>}, {transform_indices = @transform_3, window_bounds = array<i64: 1, 4, 256>}, {transform_indices = @transform_4, window_bounds = array<i64: 1, 4, 256>}]} {
    %c0 = arith.constant 0 : index
    %c0_0 = arith.constant 0 : index
    %0 = vector.load %arg2[%c0, %c0_0] : memref<2x1xf32, #tpu.memory_space<vmem>>, vector<2x1xf32>
    %1 = vector.shape_cast %0 : vector<2x1xf32> to vector<2x1xf32>
    %2 = vector.broadcast %1 : vector<2x1xf32> to vector<2x256xf32>
    %c0_1 = arith.constant 0 : index
    %c0_2 = arith.constant 0 : index
    %c0_3 = arith.constant 0 : index
    %3 = vector.load %arg4[%c0_1, %c0_2, %c0_3] : memref<1x4x256xf32, #tpu.memory_space<vmem>>, vector<1x2x256xf32>
    %4 = vector.shape_cast %3 : vector<1x2x256xf32> to vector<2x256xf32>
    %c17_i32 = arith.constant 17 : i32
    %5 = tpu.dynamic_rotate %4 by %c17_i32 dim 1 : vector<2x256xf32>, i32 -> vector<2x256xf32>
    %c0_4 = arith.constant 0 : index
    %c0_5 = arith.constant 0 : index
    %c0_6 = arith.constant 0 : index
    %6 = vector.load %arg3[%c0_4, %c0_5, %c0_6] : memref<9x1x256xf32, #tpu.memory_space<vmem>>, vector<1x1x256xf32>
    %7 = vector.shape_cast %6 : vector<1x1x256xf32> to vector<1x256xf32>
    %8 = vector.broadcast %7 : vector<1x256xf32> to vector<2x256xf32>
    %9 = arith.mulf %5, %8 : vector<2x256xf32>
    %c0_7 = arith.constant 0 : index
    %c0_8 = arith.constant 0 : index
    %c0_9 = arith.constant 0 : index
    %10 = vector.load %arg1[%c0_7, %c0_8, %c0_9] : memref<18x2x1xf32, #tpu.memory_space<vmem>>, vector<1x2x1xf32>
    %11 = vector.shape_cast %10 : vector<1x2x1xf32> to vector<2x1xf32>
    %12 = vector.extract_strided_slice %9 {offsets = [0, 0], sizes = [1, 256], strides = [1, 1]} : vector<2x256xf32> to vector<1x256xf32>
    %13 = vector.broadcast %12 : vector<1x256xf32> to vector<2x256xf32>
    %14 = vector.broadcast %11 : vector<2x1xf32> to vector<2x256xf32>
    %15 = arith.mulf %13, %14 : vector<2x256xf32>
    %16 = arith.addf %2, %15 : vector<2x256xf32>
    %c1 = arith.constant 1 : index
    %c0_10 = arith.constant 0 : index
    %c0_11 = arith.constant 0 : index
    %17 = vector.load %arg1[%c1, %c0_10, %c0_11] : memref<18x2x1xf32, #tpu.memory_space<vmem>>, vector<1x2x1xf32>
    %18 = vector.shape_cast %17 : vector<1x2x1xf32> to vector<2x1xf32>
    %19 = vector.extract_strided_slice %9 {offsets = [1, 0], sizes = [1, 256], strides = [1, 1]} : vector<2x256xf32> to vector<1x256xf32>
    %20 = vector.broadcast %19 : vector<1x256xf32> to vector<2x256xf32>
    %21 = vector.broadcast %18 : vector<2x1xf32> to vector<2x256xf32>
    %22 = arith.mulf %20, %21 : vector<2x256xf32>
    %23 = arith.addf %16, %22 : vector<2x256xf32>
    %c16_i32 = arith.constant 16 : i32
    %24 = tpu.dynamic_rotate %4 by %c16_i32 dim 1 : vector<2x256xf32>, i32 -> vector<2x256xf32>
    %c1_12 = arith.constant 1 : index
    %c0_13 = arith.constant 0 : index
    %c0_14 = arith.constant 0 : index
    %25 = vector.load %arg3[%c1_12, %c0_13, %c0_14] : memref<9x1x256xf32, #tpu.memory_space<vmem>>, vector<1x1x256xf32>
    %26 = vector.shape_cast %25 : vector<1x1x256xf32> to vector<1x256xf32>
    %27 = vector.broadcast %26 : vector<1x256xf32> to vector<2x256xf32>
    %28 = arith.mulf %24, %27 : vector<2x256xf32>
    %c2 = arith.constant 2 : index
    %c0_15 = arith.constant 0 : index
    %c0_16 = arith.constant 0 : index
    %29 = vector.load %arg1[%c2, %c0_15, %c0_16] : memref<18x2x1xf32, #tpu.memory_space<vmem>>, vector<1x2x1xf32>
    %30 = vector.shape_cast %29 : vector<1x2x1xf32> to vector<2x1xf32>
    %31 = vector.extract_strided_slice %28 {offsets = [0, 0], sizes = [1, 256], strides = [1, 1]} : vector<2x256xf32> to vector<1x256xf32>
    %32 = vector.broadcast %31 : vector<1x256xf32> to vector<2x256xf32>
    %33 = vector.broadcast %30 : vector<2x1xf32> to vector<2x256xf32>
    %34 = arith.mulf %32, %33 : vector<2x256xf32>
    %35 = arith.addf %23, %34 : vector<2x256xf32>
    %c3 = arith.constant 3 : index
    %c0_17 = arith.constant 0 : index
    %c0_18 = arith.constant 0 : index
    %36 = vector.load %arg1[%c3, %c0_17, %c0_18] : memref<18x2x1xf32, #tpu.memory_space<vmem>>, vector<1x2x1xf32>
    %37 = vector.shape_cast %36 : vector<1x2x1xf32> to vector<2x1xf32>
    %38 = vector.extract_strided_slice %28 {offsets = [1, 0], sizes = [1, 256], strides = [1, 1]} : vector<2x256xf32> to vector<1x256xf32>
    %39 = vector.broadcast %38 : vector<1x256xf32> to vector<2x256xf32>
    %40 = vector.broadcast %37 : vector<2x1xf32> to vector<2x256xf32>
    %41 = arith.mulf %39, %40 : vector<2x256xf32>
    %42 = arith.addf %35, %41 : vector<2x256xf32>
    %c15_i32 = arith.constant 15 : i32
    %43 = tpu.dynamic_rotate %4 by %c15_i32 dim 1 : vector<2x256xf32>, i32 -> vector<2x256xf32>
    %c2_19 = arith.constant 2 : index
    %c0_20 = arith.constant 0 : index
    %c0_21 = arith.constant 0 : index
    %44 = vector.load %arg3[%c2_19, %c0_20, %c0_21] : memref<9x1x256xf32, #tpu.memory_space<vmem>>, vector<1x1x256xf32>
    %45 = vector.shape_cast %44 : vector<1x1x256xf32> to vector<1x256xf32>
    %46 = vector.broadcast %45 : vector<1x256xf32> to vector<2x256xf32>
    %47 = arith.mulf %43, %46 : vector<2x256xf32>
    %c4 = arith.constant 4 : index
    %c0_22 = arith.constant 0 : index
    %c0_23 = arith.constant 0 : index
    %48 = vector.load %arg1[%c4, %c0_22, %c0_23] : memref<18x2x1xf32, #tpu.memory_space<vmem>>, vector<1x2x1xf32>
    %49 = vector.shape_cast %48 : vector<1x2x1xf32> to vector<2x1xf32>
    %50 = vector.extract_strided_slice %47 {offsets = [0, 0], sizes = [1, 256], strides = [1, 1]} : vector<2x256xf32> to vector<1x256xf32>
    %51 = vector.broadcast %50 : vector<1x256xf32> to vector<2x256xf32>
    %52 = vector.broadcast %49 : vector<2x1xf32> to vector<2x256xf32>
    %53 = arith.mulf %51, %52 : vector<2x256xf32>
    %54 = arith.addf %42, %53 : vector<2x256xf32>
    %c5 = arith.constant 5 : index
    %c0_24 = arith.constant 0 : index
    %c0_25 = arith.constant 0 : index
    %55 = vector.load %arg1[%c5, %c0_24, %c0_25] : memref<18x2x1xf32, #tpu.memory_space<vmem>>, vector<1x2x1xf32>
    %56 = vector.shape_cast %55 : vector<1x2x1xf32> to vector<2x1xf32>
    %57 = vector.extract_strided_slice %47 {offsets = [1, 0], sizes = [1, 256], strides = [1, 1]} : vector<2x256xf32> to vector<1x256xf32>
    %58 = vector.broadcast %57 : vector<1x256xf32> to vector<2x256xf32>
    %59 = vector.broadcast %56 : vector<2x1xf32> to vector<2x256xf32>
    %60 = arith.mulf %58, %59 : vector<2x256xf32>
    %61 = arith.addf %54, %60 : vector<2x256xf32>
    %c1_i32 = arith.constant 1 : i32
    %62 = tpu.dynamic_rotate %4 by %c1_i32 dim 1 : vector<2x256xf32>, i32 -> vector<2x256xf32>
    %c3_26 = arith.constant 3 : index
    %c0_27 = arith.constant 0 : index
    %c0_28 = arith.constant 0 : index
    %63 = vector.load %arg3[%c3_26, %c0_27, %c0_28] : memref<9x1x256xf32, #tpu.memory_space<vmem>>, vector<1x1x256xf32>
    %64 = vector.shape_cast %63 : vector<1x1x256xf32> to vector<1x256xf32>
    %65 = vector.broadcast %64 : vector<1x256xf32> to vector<2x256xf32>
    %66 = arith.mulf %62, %65 : vector<2x256xf32>
    %c6 = arith.constant 6 : index
    %c0_29 = arith.constant 0 : index
    %c0_30 = arith.constant 0 : index
    %67 = vector.load %arg1[%c6, %c0_29, %c0_30] : memref<18x2x1xf32, #tpu.memory_space<vmem>>, vector<1x2x1xf32>
    %68 = vector.shape_cast %67 : vector<1x2x1xf32> to vector<2x1xf32>
    %69 = vector.extract_strided_slice %66 {offsets = [0, 0], sizes = [1, 256], strides = [1, 1]} : vector<2x256xf32> to vector<1x256xf32>
    %70 = vector.broadcast %69 : vector<1x256xf32> to vector<2x256xf32>
    %71 = vector.broadcast %68 : vector<2x1xf32> to vector<2x256xf32>
    %72 = arith.mulf %70, %71 : vector<2x256xf32>
    %73 = arith.addf %61, %72 : vector<2x256xf32>
    %c7 = arith.constant 7 : index
    %c0_31 = arith.constant 0 : index
    %c0_32 = arith.constant 0 : index
    %74 = vector.load %arg1[%c7, %c0_31, %c0_32] : memref<18x2x1xf32, #tpu.memory_space<vmem>>, vector<1x2x1xf32>
    %75 = vector.shape_cast %74 : vector<1x2x1xf32> to vector<2x1xf32>
    %76 = vector.extract_strided_slice %66 {offsets = [1, 0], sizes = [1, 256], strides = [1, 1]} : vector<2x256xf32> to vector<1x256xf32>
    %77 = vector.broadcast %76 : vector<1x256xf32> to vector<2x256xf32>
    %78 = vector.broadcast %75 : vector<2x1xf32> to vector<2x256xf32>
    %79 = arith.mulf %77, %78 : vector<2x256xf32>
    %80 = arith.addf %73, %79 : vector<2x256xf32>
    %c8 = arith.constant 8 : index
    %c0_33 = arith.constant 0 : index
    %c0_34 = arith.constant 0 : index
    %81 = vector.load %arg1[%c8, %c0_33, %c0_34] : memref<18x2x1xf32, #tpu.memory_space<vmem>>, vector<1x2x1xf32>
    %82 = vector.shape_cast %81 : vector<1x2x1xf32> to vector<2x1xf32>
    %83 = vector.extract_strided_slice %4 {offsets = [0, 0], sizes = [1, 256], strides = [1, 1]} : vector<2x256xf32> to vector<1x256xf32>
    %84 = vector.broadcast %83 : vector<1x256xf32> to vector<2x256xf32>
    %85 = vector.broadcast %82 : vector<2x1xf32> to vector<2x256xf32>
    %86 = arith.mulf %84, %85 : vector<2x256xf32>
    %87 = arith.addf %80, %86 : vector<2x256xf32>
    %c9 = arith.constant 9 : index
    %c0_35 = arith.constant 0 : index
    %c0_36 = arith.constant 0 : index
    %88 = vector.load %arg1[%c9, %c0_35, %c0_36] : memref<18x2x1xf32, #tpu.memory_space<vmem>>, vector<1x2x1xf32>
    %89 = vector.shape_cast %88 : vector<1x2x1xf32> to vector<2x1xf32>
    %90 = vector.extract_strided_slice %4 {offsets = [1, 0], sizes = [1, 256], strides = [1, 1]} : vector<2x256xf32> to vector<1x256xf32>
    %91 = vector.broadcast %90 : vector<1x256xf32> to vector<2x256xf32>
    %92 = vector.broadcast %89 : vector<2x1xf32> to vector<2x256xf32>
    %93 = arith.mulf %91, %92 : vector<2x256xf32>
    %94 = arith.addf %87, %93 : vector<2x256xf32>
    %c255_i32 = arith.constant 255 : i32
    %95 = tpu.dynamic_rotate %4 by %c255_i32 dim 1 : vector<2x256xf32>, i32 -> vector<2x256xf32>
    %c5_37 = arith.constant 5 : index
    %c0_38 = arith.constant 0 : index
    %c0_39 = arith.constant 0 : index
    %96 = vector.load %arg3[%c5_37, %c0_38, %c0_39] : memref<9x1x256xf32, #tpu.memory_space<vmem>>, vector<1x1x256xf32>
    %97 = vector.shape_cast %96 : vector<1x1x256xf32> to vector<1x256xf32>
    %98 = vector.broadcast %97 : vector<1x256xf32> to vector<2x256xf32>
    %99 = arith.mulf %95, %98 : vector<2x256xf32>
    %c10 = arith.constant 10 : index
    %c0_40 = arith.constant 0 : index
    %c0_41 = arith.constant 0 : index
    %100 = vector.load %arg1[%c10, %c0_40, %c0_41] : memref<18x2x1xf32, #tpu.memory_space<vmem>>, vector<1x2x1xf32>
    %101 = vector.shape_cast %100 : vector<1x2x1xf32> to vector<2x1xf32>
    %102 = vector.extract_strided_slice %99 {offsets = [0, 0], sizes = [1, 256], strides = [1, 1]} : vector<2x256xf32> to vector<1x256xf32>
    %103 = vector.broadcast %102 : vector<1x256xf32> to vector<2x256xf32>
    %104 = vector.broadcast %101 : vector<2x1xf32> to vector<2x256xf32>
    %105 = arith.mulf %103, %104 : vector<2x256xf32>
    %106 = arith.addf %94, %105 : vector<2x256xf32>
    %c11 = arith.constant 11 : index
    %c0_42 = arith.constant 0 : index
    %c0_43 = arith.constant 0 : index
    %107 = vector.load %arg1[%c11, %c0_42, %c0_43] : memref<18x2x1xf32, #tpu.memory_space<vmem>>, vector<1x2x1xf32>
    %108 = vector.shape_cast %107 : vector<1x2x1xf32> to vector<2x1xf32>
    %109 = vector.extract_strided_slice %99 {offsets = [1, 0], sizes = [1, 256], strides = [1, 1]} : vector<2x256xf32> to vector<1x256xf32>
    %110 = vector.broadcast %109 : vector<1x256xf32> to vector<2x256xf32>
    %111 = vector.broadcast %108 : vector<2x1xf32> to vector<2x256xf32>
    %112 = arith.mulf %110, %111 : vector<2x256xf32>
    %113 = arith.addf %106, %112 : vector<2x256xf32>
    %c241_i32 = arith.constant 241 : i32
    %114 = tpu.dynamic_rotate %4 by %c241_i32 dim 1 : vector<2x256xf32>, i32 -> vector<2x256xf32>
    %c6_44 = arith.constant 6 : index
    %c0_45 = arith.constant 0 : index
    %c0_46 = arith.constant 0 : index
    %115 = vector.load %arg3[%c6_44, %c0_45, %c0_46] : memref<9x1x256xf32, #tpu.memory_space<vmem>>, vector<1x1x256xf32>
    %116 = vector.shape_cast %115 : vector<1x1x256xf32> to vector<1x256xf32>
    %117 = vector.broadcast %116 : vector<1x256xf32> to vector<2x256xf32>
    %118 = arith.mulf %114, %117 : vector<2x256xf32>
    %c12 = arith.constant 12 : index
    %c0_47 = arith.constant 0 : index
    %c0_48 = arith.constant 0 : index
    %119 = vector.load %arg1[%c12, %c0_47, %c0_48] : memref<18x2x1xf32, #tpu.memory_space<vmem>>, vector<1x2x1xf32>
    %120 = vector.shape_cast %119 : vector<1x2x1xf32> to vector<2x1xf32>
    %121 = vector.extract_strided_slice %118 {offsets = [0, 0], sizes = [1, 256], strides = [1, 1]} : vector<2x256xf32> to vector<1x256xf32>
    %122 = vector.broadcast %121 : vector<1x256xf32> to vector<2x256xf32>
    %123 = vector.broadcast %120 : vector<2x1xf32> to vector<2x256xf32>
    %124 = arith.mulf %122, %123 : vector<2x256xf32>
    %125 = arith.addf %113, %124 : vector<2x256xf32>
    %c13 = arith.constant 13 : index
    %c0_49 = arith.constant 0 : index
    %c0_50 = arith.constant 0 : index
    %126 = vector.load %arg1[%c13, %c0_49, %c0_50] : memref<18x2x1xf32, #tpu.memory_space<vmem>>, vector<1x2x1xf32>
    %127 = vector.shape_cast %126 : vector<1x2x1xf32> to vector<2x1xf32>
    %128 = vector.extract_strided_slice %118 {offsets = [1, 0], sizes = [1, 256], strides = [1, 1]} : vector<2x256xf32> to vector<1x256xf32>
    %129 = vector.broadcast %128 : vector<1x256xf32> to vector<2x256xf32>
    %130 = vector.broadcast %127 : vector<2x1xf32> to vector<2x256xf32>
    %131 = arith.mulf %129, %130 : vector<2x256xf32>
    %132 = arith.addf %125, %131 : vector<2x256xf32>
    %c240_i32 = arith.constant 240 : i32
    %133 = tpu.dynamic_rotate %4 by %c240_i32 dim 1 : vector<2x256xf32>, i32 -> vector<2x256xf32>
    %c7_51 = arith.constant 7 : index
    %c0_52 = arith.constant 0 : index
    %c0_53 = arith.constant 0 : index
    %134 = vector.load %arg3[%c7_51, %c0_52, %c0_53] : memref<9x1x256xf32, #tpu.memory_space<vmem>>, vector<1x1x256xf32>
    %135 = vector.shape_cast %134 : vector<1x1x256xf32> to vector<1x256xf32>
    %136 = vector.broadcast %135 : vector<1x256xf32> to vector<2x256xf32>
    %137 = arith.mulf %133, %136 : vector<2x256xf32>
    %c14 = arith.constant 14 : index
    %c0_54 = arith.constant 0 : index
    %c0_55 = arith.constant 0 : index
    %138 = vector.load %arg1[%c14, %c0_54, %c0_55] : memref<18x2x1xf32, #tpu.memory_space<vmem>>, vector<1x2x1xf32>
    %139 = vector.shape_cast %138 : vector<1x2x1xf32> to vector<2x1xf32>
    %140 = vector.extract_strided_slice %137 {offsets = [0, 0], sizes = [1, 256], strides = [1, 1]} : vector<2x256xf32> to vector<1x256xf32>
    %141 = vector.broadcast %140 : vector<1x256xf32> to vector<2x256xf32>
    %142 = vector.broadcast %139 : vector<2x1xf32> to vector<2x256xf32>
    %143 = arith.mulf %141, %142 : vector<2x256xf32>
    %144 = arith.addf %132, %143 : vector<2x256xf32>
    %c15 = arith.constant 15 : index
    %c0_56 = arith.constant 0 : index
    %c0_57 = arith.constant 0 : index
    %145 = vector.load %arg1[%c15, %c0_56, %c0_57] : memref<18x2x1xf32, #tpu.memory_space<vmem>>, vector<1x2x1xf32>
    %146 = vector.shape_cast %145 : vector<1x2x1xf32> to vector<2x1xf32>
    %147 = vector.extract_strided_slice %137 {offsets = [1, 0], sizes = [1, 256], strides = [1, 1]} : vector<2x256xf32> to vector<1x256xf32>
    %148 = vector.broadcast %147 : vector<1x256xf32> to vector<2x256xf32>
    %149 = vector.broadcast %146 : vector<2x1xf32> to vector<2x256xf32>
    %150 = arith.mulf %148, %149 : vector<2x256xf32>
    %151 = arith.addf %144, %150 : vector<2x256xf32>
    %c239_i32 = arith.constant 239 : i32
    %152 = tpu.dynamic_rotate %4 by %c239_i32 dim 1 : vector<2x256xf32>, i32 -> vector<2x256xf32>
    %c8_58 = arith.constant 8 : index
    %c0_59 = arith.constant 0 : index
    %c0_60 = arith.constant 0 : index
    %153 = vector.load %arg3[%c8_58, %c0_59, %c0_60] : memref<9x1x256xf32, #tpu.memory_space<vmem>>, vector<1x1x256xf32>
    %154 = vector.shape_cast %153 : vector<1x1x256xf32> to vector<1x256xf32>
    %155 = vector.broadcast %154 : vector<1x256xf32> to vector<2x256xf32>
    %156 = arith.mulf %152, %155 : vector<2x256xf32>
    %c16 = arith.constant 16 : index
    %c0_61 = arith.constant 0 : index
    %c0_62 = arith.constant 0 : index
    %157 = vector.load %arg1[%c16, %c0_61, %c0_62] : memref<18x2x1xf32, #tpu.memory_space<vmem>>, vector<1x2x1xf32>
    %158 = vector.shape_cast %157 : vector<1x2x1xf32> to vector<2x1xf32>
    %159 = vector.extract_strided_slice %156 {offsets = [0, 0], sizes = [1, 256], strides = [1, 1]} : vector<2x256xf32> to vector<1x256xf32>
    %160 = vector.broadcast %159 : vector<1x256xf32> to vector<2x256xf32>
    %161 = vector.broadcast %158 : vector<2x1xf32> to vector<2x256xf32>
    %162 = arith.mulf %160, %161 : vector<2x256xf32>
    %163 = arith.addf %151, %162 : vector<2x256xf32>
    %c17 = arith.constant 17 : index
    %c0_63 = arith.constant 0 : index
    %c0_64 = arith.constant 0 : index
    %164 = vector.load %arg1[%c17, %c0_63, %c0_64] : memref<18x2x1xf32, #tpu.memory_space<vmem>>, vector<1x2x1xf32>
    %165 = vector.shape_cast %164 : vector<1x2x1xf32> to vector<2x1xf32>
    %166 = vector.extract_strided_slice %156 {offsets = [1, 0], sizes = [1, 256], strides = [1, 1]} : vector<2x256xf32> to vector<1x256xf32>
    %167 = vector.broadcast %166 : vector<1x256xf32> to vector<2x256xf32>
    %168 = vector.broadcast %165 : vector<2x1xf32> to vector<2x256xf32>
    %169 = arith.mulf %167, %168 : vector<2x256xf32>
    %170 = arith.addf %163, %169 : vector<2x256xf32>
    %c0_65 = arith.constant 0 : index
    %c0_66 = arith.constant 0 : index
    %c0_67 = arith.constant 0 : index
    %171 = vector.load %arg5[%c0_65, %c0_66, %c0_67] : memref<1x4x256xf32, #tpu.memory_space<vmem>>, vector<1x2x256xf32>
    %172 = vector.shape_cast %171 : vector<1x2x256xf32> to vector<2x256xf32>
    %173 = vector.shape_cast %170 : vector<2x256xf32> to vector<1x2x256xf32>
    tpu.vector_store %arg5[%c0_65, %c0_66, %c0_67], %173 {strides = array<i32>} : memref<1x4x256xf32, #tpu.memory_space<vmem>>, vector<1x2x256xf32>,
    %c0_68 = arith.constant 0 : index
    %c2_69 = arith.constant 2 : index
    %c0_70 = arith.constant 0 : index
    %174 = vector.load %arg4[%c0_68, %c2_69, %c0_70] : memref<1x4x256xf32, #tpu.memory_space<vmem>>, vector<1x2x256xf32>
    %175 = vector.shape_cast %174 : vector<1x2x256xf32> to vector<2x256xf32>
    %c0_71 = arith.constant 0 : index
    %c2_72 = arith.constant 2 : index
    %c0_73 = arith.constant 0 : index
    %176 = vector.load %arg5[%c0_71, %c2_72, %c0_73] : memref<1x4x256xf32, #tpu.memory_space<vmem>>, vector<1x2x256xf32>
    %177 = vector.shape_cast %176 : vector<1x2x256xf32> to vector<2x256xf32>
    %178 = vector.shape_cast %175 : vector<2x256xf32> to vector<1x2x256xf32>
    tpu.vector_store %arg5[%c0_71, %c2_72, %c0_73], %178 {strides = array<i32>} : memref<1x4x256xf32, #tpu.memory_space<vmem>>, vector<1x2x256xf32>,
    return
  }
  func.func @transform_0(%arg0: i32) -> (i32, i32, i32) {
    %c0_i32 = arith.constant 0 : i32
    %c0_i32_0 = arith.constant 0 : i32
    %c0_i32_1 = arith.constant 0 : i32
    %c0_i32_2 = arith.constant 0 : i32
    return %c0_i32, %c0_i32_0, %c0_i32_1 : i32, i32, i32
  }
  func.func @transform_1(%arg0: i32) -> (i32, i32) {
    %c0_i32 = arith.constant 0 : i32
    %c0_i32_0 = arith.constant 0 : i32
    %c0_i32_1 = arith.constant 0 : i32
    return %c0_i32, %c0_i32_0 : i32, i32
  }
  func.func @transform_2(%arg0: i32) -> (i32, i32, i32) {
    %c0_i32 = arith.constant 0 : i32
    %c0_i32_0 = arith.constant 0 : i32
    %c0_i32_1 = arith.constant 0 : i32
    %c0_i32_2 = arith.constant 0 : i32
    return %c0_i32, %c0_i32_0, %c0_i32_1 : i32, i32, i32
  }
  func.func @transform_3(%arg0: i32) -> (i32, i32, i32) {
    %c0_i32 = arith.constant 0 : i32
    %c0_i32_0 = arith.constant 0 : i32
    %c0_i32_1 = arith.constant 0 : i32
    return %arg0, %c0_i32, %c0_i32_0 : i32, i32, i32
  }
  func.func @transform_4(%arg0: i32) -> (i32, i32, i32) {
    %c0_i32 = arith.constant 0 : i32
    %c0_i32_0 = arith.constant 0 : i32
    %c0_i32_1 = arith.constant 0 : i32
    return %arg0, %c0_i32, %c0_i32_0 : i32, i32, i32
  }
}

</mosaic_0001>

<llo_original>
// kernel: tpu_custom_call.1
$region0: #{tpu_custom_call.1}
  #allocation0 [shape = 'u32[]', space=smem, size = 0x4, offset = 0x4, fixed_abs, tag = 'smem constant byte address 0x4 - core index']
  #allocation1 [shape = 'u32[144,128]{1,0:T(1,128)}', space=vmem, size = 0x12000, scoped, tag = 'internal scratch']
  %s0 = inlined_call_operand.vmem [shape: f32[18,2,1], index: 0, kind: input, shape index: {}]
  %s1 = inlined_call_operand.vmem [shape: f32[2,1], index: 1, kind: input, shape index: {}]
  %s2 = inlined_call_operand.vmem [shape: f32[9,1,256], index: 2, kind: input, shape index: {}]
  %s3 = inlined_call_operand.vmem [shape: f32[2,4,256], index: 3, kind: input, shape index: {}]
  %s4 = inlined_call_operand.hbm [shape: f32[2,4,256], index: 4, kind: output, shape index: {}]
  %s5 = sld [smem:[#allocation0]]
  $region49: #{tpu_custom_call.1} parent=0
    _
  %s7 = ssub.s32 1, %s5
  %s8 = scalar_select 0, %s7, %s5
  $region1: #{tpu_custom_call.1} parent=0
    #allocation2 [shape = 'u8[8192]{0}', space=vmem, size = 0x2000, scoped, tag = 'output window, operand 0']
    #allocation3 [shape = 's32[2]{0}', space=sflag, size = 0x8, scoped, tag = 'scoped memory for tpu_custom_call.1']
    %9 = vsyncpa [#allocation3], 0
    %s10 = scalar_lea.sflag [#allocation3], 1
    %11 = vsyncpa %s10, 0
    loop: start=0, step=1, limit=4
    $region2: #{tpu_custom_call.1} parent=1 // loop_pre_header
      _
    $region3: #{tpu_custom_call.1} parent=1 // loop_header
      %s13 = sphi 0, %s17
      %p14 = scmp.ge.s32.totalorder %s13, 4
      %s21 = sphi 0, %s21
      %s23 = sphi 0, %s21
      %s24 = sphi 0, %s23
      %s38 = sphi 0, %s24
      %s42 = sphi 0, %s42
      %s44 = sphi 0, %s42
      %s45 = sphi 0, %s44
      %s59 = sphi 0, %s45
      %s63 = sphi 0, %s63
      %s65 = sphi 0, %s63
      %s66 = sphi 0, %s65
      %s80 = sphi 0, %s66
      %s86 = sphi 0, %s88
      %s89 = sphi 0, %s86
      %s90 = sphi 0, %s89
      %s106 = sphi 0, %s90
      %s112 = sphi 0, %s114
      %s115 = sphi 0, %s112
      %s116 = sphi 0, %s115
      %s132 = sphi 0, %s116
    $region4: #{tpu_custom_call.1} parent=1 // loop_header_branch
      %16 = sbr.rel (%p14) target = $region8
    $region5: #{tpu_custom_call.1} parent=1 // loop_body
      %s18 = ssub.s32 %s13, 1
      %s19 = ssub.s32 %s13, 2
      %s20 = sadd.s32 %s13, 1
      %s22 = sadd.s32 %s21, 1
      %p25 = scmp.eq.s32.totalorder %s13, 1
      %p26 = scmp.ne.s32.totalorder %s21, %s23
      %p27 = scmp.eq.s32.totalorder %s13, 0
      %p28 = por %p26, %p27
      %p29 = scmp.ne.s32.totalorder %s21, %s23
      %p30 = scmp.eq.s32.totalorder %s18, 1
      %p31 = por %p29, %p30
      %p32 = scmp.ne.s32.totalorder %s23, %s24
      %p33 = scmp.eq.s32.totalorder %s18, 0
      %p34 = por %p32, %p33
      %p35 = scmp.ne.s32.totalorder %s23, %s24
      %p36 = scmp.eq.s32.totalorder %s19, 1
      %p37 = por %p35, %p36
      %p39 = scmp.ne.s32.totalorder %s24, %s38
      %p40 = scmp.eq.s32.totalorder %s19, 0
      %p41 = por %p39, %p40
      %s43 = sadd.s32 %s42, 1
      %p46 = scmp.eq.s32.totalorder %s13, 1
      %p47 = scmp.ne.s32.totalorder %s42, %s44
      %p48 = scmp.eq.s32.totalorder %s13, 0
      %p49 = por %p47, %p48
      %p50 = scmp.ne.s32.totalorder %s42, %s44
      %p51 = scmp.eq.s32.totalorder %s18, 1
      %p52 = por %p50, %p51
      %p53 = scmp.ne.s32.totalorder %s44, %s45
      %p54 = scmp.eq.s32.totalorder %s18, 0
      %p55 = por %p53, %p54
      %p56 = scmp.ne.s32.totalorder %s44, %s45
      %p57 = scmp.eq.s32.totalorder %s19, 1
      %p58 = por %p56, %p57
      %p60 = scmp.ne.s32.totalorder %s45, %s59
      %p61 = scmp.eq.s32.totalorder %s19, 0
      %p62 = por %p60, %p61
      %s64 = sadd.s32 %s63, 1
      %p67 = scmp.eq.s32.totalorder %s13, 1
      %p68 = scmp.ne.s32.totalorder %s63, %s65
      %p69 = scmp.eq.s32.totalorder %s13, 0
      %p70 = por %p68, %p69
      %p71 = scmp.ne.s32.totalorder %s63, %s65
      %p72 = scmp.eq.s32.totalorder %s18, 1
      %p73 = por %p71, %p72
      %p74 = scmp.ne.s32.totalorder %s65, %s66
      %p75 = scmp.eq.s32.totalorder %s18, 0
      %p76 = por %p74, %p75
      %p77 = scmp.ne.s32.totalorder %s65, %s66
      %p78 = scmp.eq.s32.totalorder %s19, 1
      %p79 = por %p77, %p78
      %p81 = scmp.ne.s32.totalorder %s66, %s80
      %p82 = scmp.eq.s32.totalorder %s19, 0
      %p83 = por %p81, %p82
      %s84 = ssub.s32 %s13, %s20
      %p85 = scmp.eq.s32.totalorder %s84, 0
      %s87 = sadd.s32 %s86, 1
      %s88 = scalar_select %p85, %s86, %s87
      %p91 = pneg %p85
      %p92 = scmp.eq.s32.totalorder %s13, 1
      %p93 = por %p91, %p92
      %p94 = scmp.ne.s32.totalorder %s86, %s89
      %p95 = scmp.eq.s32.totalorder %s13, 0
      %p96 = por %p94, %p95
      %p97 = scmp.ne.s32.totalorder %s86, %s89
      %p98 = scmp.eq.s32.totalorder %s18, 1
      %p99 = por %p97, %p98
      %p100 = scmp.ne.s32.totalorder %s89, %s90
      %p101 = scmp.eq.s32.totalorder %s18, 0
      %p102 = por %p100, %p101
      %p103 = scmp.ne.s32.totalorder %s89, %s90
      %p104 = scmp.eq.s32.totalorder %s19, 1
      %p105 = por %p103, %p104
      %p107 = scmp.ne.s32.totalorder %s90, %s106
      %p108 = scmp.eq.s32.totalorder %s19, 0
      %p109 = por %p107, %p108
      %s110 = ssub.s32 %s13, %s20
      %p111 = scmp.eq.s32.totalorder %s110, 0
      %s113 = sadd.s32 %s112, 1
      %s114 = scalar_select %p111, %s112, %s113
      %p117 = pneg %p111
      %p118 = scmp.eq.s32.totalorder %s13, 1
      %p119 = por %p117, %p118
      %p120 = scmp.ne.s32.totalorder %s112, %s115
      %p121 = scmp.eq.s32.totalorder %s13, 0
      %p122 = por %p120, %p121
      %p123 = scmp.ne.s32.totalorder %s112, %s115
      %p124 = scmp.eq.s32.totalorder %s18, 1
      %p125 = por %p123, %p124
      %p126 = scmp.ne.s32.totalorder %s115, %s116
      %p127 = scmp.eq.s32.totalorder %s18, 0
      %p128 = por %p126, %p127
      %p129 = scmp.ne.s32.totalorder %s115, %s116
      %p130 = scmp.eq.s32.totalorder %s19, 1
      %p131 = por %p129, %p130
      %p133 = scmp.ne.s32.totalorder %s116, %s132
      %p134 = scmp.eq.s32.totalorder %s19, 0
      %p135 = por %p133, %p134
      %p136 = scmp.le.s32.totalorder 1, %s13
      %p137 = scmp.lt.s32.totalorder %s13, 3
      %p138 = pnand %p136, %p137
      %p139 = pneg %p138
      // Predicated region
      $region9: #{tpu_custom_call.1} parent=5 // pred_check
        _
      $region10: #{tpu_custom_call.1} parent=5 // pred_check_branch
        %141 = sbr.rel (%p138) target = $region12
      $region11: #{tpu_custom_call.1} parent=5 // pred_region
        %s142 = ssub.s32 %s13, 1
        // Predicated region
        $region13: #{tpu_custom_call.1} parent=11 // pred_check
          %p143 = pneg %p34
        $region14: #{tpu_custom_call.1} parent=11 // pred_check_branch
          %145 = sbr.rel (%p143) target = $region16
        $region15: #{tpu_custom_call.1} parent=11 // pred_region
          _
        $region16: #{tpu_custom_call.1} parent=11 // pred_fallthru
          _
        // Predicated region
        $region17: #{tpu_custom_call.1} parent=11 // pred_check
          %p146 = pneg %p55
        $region18: #{tpu_custom_call.1} parent=11 // pred_check_branch
          %148 = sbr.rel (%p146) target = $region20
        $region19: #{tpu_custom_call.1} parent=11 // pred_region
          _
        $region20: #{tpu_custom_call.1} parent=11 // pred_fallthru
          _
        // Predicated region
        $region21: #{tpu_custom_call.1} parent=11 // pred_check
          %p149 = pneg %p76
        $region22: #{tpu_custom_call.1} parent=11 // pred_check_branch
          %151 = sbr.rel (%p149) target = $region24
        $region23: #{tpu_custom_call.1} parent=11 // pred_region
          _
        $region24: #{tpu_custom_call.1} parent=11 // pred_fallthru
          _
      $region12: #{tpu_custom_call.1} parent=5 // pred_fallthru
        _
      %p152 = scmp.lt.s32.totalorder %s13, 2
      // Predicated region
      $region25: #{tpu_custom_call.1} parent=5 // pred_check
        %p153 = pneg %p152
      $region26: #{tpu_custom_call.1} parent=5 // pred_check_branch
        %155 = sbr.rel (%p153) target = $region28
      $region27: #{tpu_custom_call.1} parent=5 // pred_region
        // Predicated region
        $region29: #{tpu_custom_call.1} parent=27 // pred_check
          %p156 = pneg %p96
        $region30: #{tpu_custom_call.1} parent=27 // pred_check_branch
          %158 = sbr.rel (%p156) target = $region32
        $region31: #{tpu_custom_call.1} parent=27 // pred_region
          %p159 = scmp.lt.s32.totalorder %s13, 1
          %s160 = scalar_select %p159, %s13, 1
          %s161 = smul.addr %s160, 2
          %s162 = smul.addr %s161, 4
          %s163 = scalar_lea.vmem %s3, %s162
        $region32: #{tpu_custom_call.1} parent=27 // pred_fallthru
          _
      $region28: #{tpu_custom_call.1} parent=5 // pred_fallthru
        _
      %p164 = scmp.le.s32.totalorder 1, %s13
      %p165 = scmp.lt.s32.totalorder %s13, 3
      %p166 = pnand %p164, %p165
      %p167 = pneg %p166
      // Predicated region
      $region33: #{tpu_custom_call.1} parent=5 // pred_check
        _
      $region34: #{tpu_custom_call.1} parent=5 // pred_check_branch
        %169 = sbr.rel (%p166) target = $region36
      $region35: #{tpu_custom_call.1} parent=5 // pred_region
        %s170 = ssub.s32 %s13, 1
        %p171 = pneg %p34
        %p172 = pneg %p31
        %p173 = pneg %p55
        %p174 = pneg %p52
        %p175 = pneg %p76
        %p176 = pneg %p73
        %p177 = scmp.lt.s32.totalorder %s18, 1
        %s178 = scalar_select %p177, %s18, 1
        %s179 = smul.addr %s178, 2
        %s180 = smul.addr %s179, 4
        %s181 = scalar_lea.vmem %s3, %s180
        %p182 = pneg %p102
        %p183 = pneg %p99
        %p184 = pneg %p128
        %p185 = pneg %p125
        %s186 = sand.u32 %s115, 1
        %s187 = scalar_lea.sflag [#allocation3], %s186
        %s188 = sand.u32 %s115, 1
        %s189 = smul.addr %s188, 8
        %s190 = scalar_lea.vmem [#allocation2], %s189
        %p191 = scmp.lt.s32.totalorder %s18, 1
        %s192 = scalar_select %p191, %s18, 1
        %s193 = smul.addr %s192, 2
        %s194 = smul.addr %s193, 4
        %s195 = scalar_lea.vmem %s3, %s194
        %v196 = vld [vmem:[%s1] sm:$0x3]
        %198 = vset.pattern.permute.xlu0 0
        %199 = vperm.xlu0 %198, %v196
        %v200 = vpop.permute.xlu0 %199
        %v202 = vld [vmem:[%s195] sm:$0x33]
        %v204 = vcombine.high %v202, %v202
        %206 = vrot.lane.b32.xlu0 %v202, 17
        %v207 = vpop.permute.xlu0 %206
        %208 = vrot.lane.b32.xlu0 %v204, 17
        %v209 = vpop.permute.xlu0 %208
        %v210 = vlaneseq
        %v211 = vand.u32 %v210, 127
        %vm212 = vcmp.lt.s32.totalorder %v211, 17
        %v213 = vsel %vm212, %v207, %v209
        %v214 = vsel %vm212, %v209, %v207
        %v215 = vld [vmem:[%s2] sm:$0x3]
        %v217 = vlaneseq
        %v218 = vshrl.u32 %v217, 7
        %v219 = vsub.s32 0, %v218
        %v220 = vrot.slane %v215, %v219
        %v221 = vlaneseq
        %v222 = vshrl.u32 %v221, 7
        %v223 = vsub.s32 1, %v222
        %v224 = vrot.slane %v215, %v223
        %v227 = vmul.f32 %v214, %v220
        %v228 = vmul.f32 %v213, %v224
        %v229 = vld [vmem:[%s0] sm:$0x3]
        %v230 = vlaneseq
        %v231 = vshrl.u32 %v230, 7
        %v232 = vsub.s32 0, %v231
        %v233 = vrot.slane %v227, %v232
        %v234 = vlaneseq
        %v235 = vshrl.u32 %v234, 7
        %v236 = vsub.s32 0, %v235
        %v237 = vrot.slane %v228, %v236
        %239 = vset.pattern.permute.xlu0 0
        %240 = vperm.xlu0 %239, %v229
        %v241 = vpop.permute.xlu0 %240
        %v243 = vmul.f32 %v233, %v241
        %v244 = vmul.f32 %v237, %v241
        %v245 = vadd.f32 %v200, %v243
        %v246 = vadd.f32 %v200, %v244
        %s247 = scalar_lea.vmem %s0, 2
        %v248 = vld [vmem:[%s247] sm:$0x3]
        %v249 = vlaneseq
        %v250 = vshrl.u32 %v249, 7
        %v251 = vsub.s32 1, %v250
        %v252 = vrot.slane %v227, %v251
        %v253 = vlaneseq
        %v254 = vshrl.u32 %v253, 7
        %v255 = vsub.s32 1, %v254
        %v256 = vrot.slane %v228, %v255
        %258 = vset.pattern.permute.xlu0 0
        %259 = vperm.xlu0 %258, %v248
        %v260 = vpop.permute.xlu0 %259
        %v262 = vmul.f32 %v252, %v260
        %v263 = vmul.f32 %v256, %v260
        %v264 = vadd.f32 %v245, %v262
        %v265 = vadd.f32 %v246, %v263
        %266 = vrot.lane.b32.xlu0 %v202, 16
        %v267 = vpop.permute.xlu0 %266
        %268 = vrot.lane.b32.xlu0 %v204, 16
        %v269 = vpop.permute.xlu0 %268
        %vm270 = vcmp.lt.s32.totalorder %v211, 16
        %v271 = vsel %vm270, %v267, %v269
        %v272 = vsel %vm270, %v269, %v267
        %s273 = scalar_lea.vmem %s2, 2
        %v274 = vld [vmem:[%s273] sm:$0x3]
        %v276 = vlaneseq
        %v277 = vshrl.u32 %v276, 7
        %v278 = vsub.s32 0, %v277
        %v279 = vrot.slane %v274, %v278
        %v280 = vlaneseq
        %v281 = vshrl.u32 %v280, 7
        %v282 = vsub.s32 1, %v281
        %v283 = vrot.slane %v274, %v282
        %v286 = vmul.f32 %v272, %v279
        %v287 = vmul.f32 %v271, %v283
        %s288 = scalar_lea.vmem %s0, 4
        %v289 = vld [vmem:[%s288] sm:$0x3]
        %v290 = vlaneseq
        %v291 = vshrl.u32 %v290, 7
        %v292 = vsub.s32 0, %v291
        %v293 = vrot.slane %v286, %v292
        %v294 = vlaneseq
        %v295 = vshrl.u32 %v294, 7
        %v296 = vsub.s32 0, %v295
        %v297 = vrot.slane %v287, %v296
        %299 = vset.pattern.permute.xlu0 0
        %300 = vperm.xlu0 %299, %v289
        %v301 = vpop.permute.xlu0 %300
        %v303 = vmul.f32 %v293, %v301
        %v304 = vmul.f32 %v297, %v301
        %v305 = vadd.f32 %v264, %v303
        %v306 = vadd.f32 %v265, %v304
        %s307 = scalar_lea.vmem %s0, 6
        %v308 = vld [vmem:[%s307] sm:$0x3]
        %v309 = vlaneseq
        %v310 = vshrl.u32 %v309, 7
        %v311 = vsub.s32 1, %v310
        %v312 = vrot.slane %v286, %v311
        %v313 = vlaneseq
        %v314 = vshrl.u32 %v313, 7
        %v315 = vsub.s32 1, %v314
        %v316 = vrot.slane %v287, %v315
        %318 = vset.pattern.permute.xlu0 0
        %319 = vperm.xlu0 %318, %v308
        %v320 = vpop.permute.xlu0 %319
        %v322 = vmul.f32 %v312, %v320
        %v323 = vmul.f32 %v316, %v320
        %v324 = vadd.f32 %v305, %v322
        %v325 = vadd.f32 %v306, %v323
        %326 = vrot.lane.b32.xlu0 %v202, 15
        %v327 = vpop.permute.xlu0 %326
        %328 = vrot.lane.b32.xlu0 %v204, 15
        %v329 = vpop.permute.xlu0 %328
        %vm330 = vcmp.lt.s32.totalorder %v211, 15
        %v331 = vsel %vm330, %v327, %v329
        %v332 = vsel %vm330, %v329, %v327
        %s333 = scalar_lea.vmem %s2, 4
        %v334 = vld [vmem:[%s333] sm:$0x3]
        %v336 = vlaneseq
        %v337 = vshrl.u32 %v336, 7
        %v338 = vsub.s32 0, %v337
        %v339 = vrot.slane %v334, %v338
        %v340 = vlaneseq
        %v341 = vshrl.u32 %v340, 7
        %v342 = vsub.s32 1, %v341
        %v343 = vrot.slane %v334, %v342
        %v346 = vmul.f32 %v332, %v339
        %v347 = vmul.f32 %v331, %v343
        %s348 = scalar_lea.vmem %s0, 8
        %v349 = vld [vmem:[%s348] sm:$0x3]
        %v350 = vlaneseq
        %v351 = vshrl.u32 %v350, 7
        %v352 = vsub.s32 0, %v351
        %v353 = vrot.slane %v346, %v352
        %v354 = vlaneseq
        %v355 = vshrl.u32 %v354, 7
        %v356 = vsub.s32 0, %v355
        %v357 = vrot.slane %v347, %v356
        %359 = vset.pattern.permute.xlu0 0
        %360 = vperm.xlu0 %359, %v349
        %v361 = vpop.permute.xlu0 %360
        %v363 = vmul.f32 %v353, %v361
        %v364 = vmul.f32 %v357, %v361
        %v365 = vadd.f32 %v324, %v363
        %v366 = vadd.f32 %v325, %v364
        %s367 = scalar_lea.vmem %s0, 10
        %v368 = vld [vmem:[%s367] sm:$0x3]
        %v369 = vlaneseq
        %v370 = vshrl.u32 %v369, 7
        %v371 = vsub.s32 1, %v370
        %v372 = vrot.slane %v346, %v371
        %v373 = vlaneseq
        %v374 = vshrl.u32 %v373, 7
        %v375 = vsub.s32 1, %v374
        %v376 = vrot.slane %v347, %v375
        %378 = vset.pattern.permute.xlu0 0
        %379 = vperm.xlu0 %378, %v368
        %v380 = vpop.permute.xlu0 %379
        %v382 = vmul.f32 %v372, %v380
        %v383 = vmul.f32 %v376, %v380
        %v384 = vadd.f32 %v365, %v382
        %v385 = vadd.f32 %v366, %v383
        %386 = vrot.lane.b32.xlu0 %v202, 1
        %v387 = vpop.permute.xlu0 %386
        %388 = vrot.lane.b32.xlu0 %v204, 1
        %v389 = vpop.permute.xlu0 %388
        %vm390 = vcmp.lt.s32.totalorder %v211, 1
        %v391 = vsel %vm390, %v387, %v389
        %v392 = vsel %vm390, %v389, %v387
        %s393 = scalar_lea.vmem %s2, 6
        %v394 = vld [vmem:[%s393] sm:$0x3]
        %v396 = vlaneseq
        %v397 = vshrl.u32 %v396, 7
        %v398 = vsub.s32 0, %v397
        %v399 = vrot.slane %v394, %v398
        %v400 = vlaneseq
        %v401 = vshrl.u32 %v400, 7
        %v402 = vsub.s32 1, %v401
        %v403 = vrot.slane %v394, %v402
        %v406 = vmul.f32 %v392, %v399
        %v407 = vmul.f32 %v391, %v403
        %s408 = scalar_lea.vmem %s0, 12
        %v409 = vld [vmem:[%s408] sm:$0x3]
        %v410 = vlaneseq
        %v411 = vshrl.u32 %v410, 7
        %v412 = vsub.s32 0, %v411
        %v413 = vrot.slane %v406, %v412
        %v414 = vlaneseq
        %v415 = vshrl.u32 %v414, 7
        %v416 = vsub.s32 0, %v415
        %v417 = vrot.slane %v407, %v416
        %419 = vset.pattern.permute.xlu0 0
        %420 = vperm.xlu0 %419, %v409
        %v421 = vpop.permute.xlu0 %420
        %v423 = vmul.f32 %v413, %v421
        %v424 = vmul.f32 %v417, %v421
        %v425 = vadd.f32 %v384, %v423
        %v426 = vadd.f32 %v385, %v424
        %s427 = scalar_lea.vmem %s0, 14
        %v428 = vld [vmem:[%s427] sm:$0x3]
        %v429 = vlaneseq
        %v430 = vshrl.u32 %v429, 7
        %v431 = vsub.s32 1, %v430
        %v432 = vrot.slane %v406, %v431
        %v433 = vlaneseq
        %v434 = vshrl.u32 %v433, 7
        %v435 = vsub.s32 1, %v434
        %v436 = vrot.slane %v407, %v435
        %438 = vset.pattern.permute.xlu0 0
        %439 = vperm.xlu0 %438, %v428
        %v440 = vpop.permute.xlu0 %439
        %v442 = vmul.f32 %v432, %v440
        %v443 = vmul.f32 %v436, %v440
        %v444 = vadd.f32 %v425, %v442
        %v445 = vadd.f32 %v426, %v443
        %s446 = scalar_lea.vmem %s0, 16
        %v447 = vld [vmem:[%s446] sm:$0x3]
        %v448 = vlaneseq
        %v449 = vshrl.u32 %v448, 7
        %v450 = vsub.s32 0, %v449
        %v451 = vrot.slane %v202, %v450
        %v452 = vlaneseq
        %v453 = vshrl.u32 %v452, 7
        %v454 = vsub.s32 4, %v453
        %v455 = vrot.slane %v202, %v454
        %v458 = vlaneseq
        %v459 = vshrl.u32 %v458, 7
        %v460 = vsub.s32 0, %v459
        %v461 = vrot.slane %v451, %v460
        %v462 = vlaneseq
        %v463 = vshrl.u32 %v462, 7
        %v464 = vsub.s32 0, %v463
        %v465 = vrot.slane %v455, %v464
        %467 = vset.pattern.permute.xlu0 0
        %468 = vperm.xlu0 %467, %v447
        %v469 = vpop.permute.xlu0 %468
        %v471 = vmul.f32 %v461, %v469
        %v472 = vmul.f32 %v465, %v469
        %v473 = vadd.f32 %v444, %v471
        %v474 = vadd.f32 %v445, %v472
        %s475 = scalar_lea.vmem %s0, 18
        %v476 = vld [vmem:[%s475] sm:$0x3]
        %v477 = vlaneseq
        %v478 = vshrl.u32 %v477, 7
        %v479 = vsub.s32 1, %v478
        %v480 = vrot.slane %v202, %v479
        %v481 = vlaneseq
        %v482 = vshrl.u32 %v481, 7
        %v483 = vsub.s32 5, %v482
        %v484 = vrot.slane %v202, %v483
        %v487 = vlaneseq
        %v488 = vshrl.u32 %v487, 7
        %v489 = vsub.s32 1, %v488
        %v490 = vrot.slane %v480, %v489
        %v491 = vlaneseq
        %v492 = vshrl.u32 %v491, 7
        %v493 = vsub.s32 1, %v492
        %v494 = vrot.slane %v484, %v493
        %496 = vset.pattern.permute.xlu0 0
        %497 = vperm.xlu0 %496, %v476
        %v498 = vpop.permute.xlu0 %497
        %v500 = vmul.f32 %v490, %v498
        %v501 = vmul.f32 %v494, %v498
        %v502 = vadd.f32 %v473, %v500
        %v503 = vadd.f32 %v474, %v501
        %504 = vrot.lane.b32.xlu0 %v202, 127
        %v505 = vpop.permute.xlu0 %504
        %506 = vrot.lane.b32.xlu0 %v204, 127
        %v507 = vpop.permute.xlu0 %506
        %vm508 = vcmp.lt.s32.totalorder %v211, 127
        %v509 = vsel %vm508, %v505, %v507
        %v510 = vsel %vm508, %v507, %v505
        %s511 = scalar_lea.vmem %s2, 10
        %v512 = vld [vmem:[%s511] sm:$0x3]
        %v514 = vlaneseq
        %v515 = vshrl.u32 %v514, 7
        %v516 = vsub.s32 0, %v515
        %v517 = vrot.slane %v512, %v516
        %v518 = vlaneseq
        %v519 = vshrl.u32 %v518, 7
        %v520 = vsub.s32 1, %v519
        %v521 = vrot.slane %v512, %v520
        %v524 = vmul.f32 %v509, %v517
        %v525 = vmul.f32 %v510, %v521
        %s526 = scalar_lea.vmem %s0, 20
        %v527 = vld [vmem:[%s526] sm:$0x3]
        %v528 = vlaneseq
        %v529 = vshrl.u32 %v528, 7
        %v530 = vsub.s32 0, %v529
        %v531 = vrot.slane %v524, %v530
        %v532 = vlaneseq
        %v533 = vshrl.u32 %v532, 7
        %v534 = vsub.s32 0, %v533
        %v535 = vrot.slane %v525, %v534
        %537 = vset.pattern.permute.xlu0 0
        %538 = vperm.xlu0 %537, %v527
        %v539 = vpop.permute.xlu0 %538
        %v541 = vmul.f32 %v531, %v539
        %v542 = vmul.f32 %v535, %v539
        %v543 = vadd.f32 %v502, %v541
        %v544 = vadd.f32 %v503, %v542
        %s545 = scalar_lea.vmem %s0, 22
        %v546 = vld [vmem:[%s545] sm:$0x3]
        %v547 = vlaneseq
        %v548 = vshrl.u32 %v547, 7
        %v549 = vsub.s32 1, %v548
        %v550 = vrot.slane %v524, %v549
        %v551 = vlaneseq
        %v552 = vshrl.u32 %v551, 7
        %v553 = vsub.s32 1, %v552
        %v554 = vrot.slane %v525, %v553
        %556 = vset.pattern.permute.xlu0 0
        %557 = vperm.xlu0 %556, %v546
        %v558 = vpop.permute.xlu0 %557
        %v560 = vmul.f32 %v550, %v558
        %v561 = vmul.f32 %v554, %v558
        %v562 = vadd.f32 %v543, %v560
        %v563 = vadd.f32 %v544, %v561
        %564 = vrot.lane.b32.xlu0 %v202, 113
        %v565 = vpop.permute.xlu0 %564
        %566 = vrot.lane.b32.xlu0 %v204, 113
        %v567 = vpop.permute.xlu0 %566
        %vm568 = vcmp.lt.s32.totalorder %v211, 113
        %v569 = vsel %vm568, %v565, %v567
        %v570 = vsel %vm568, %v567, %v565
        %s571 = scalar_lea.vmem %s2, 12
        %v572 = vld [vmem:[%s571] sm:$0x3]
        %v574 = vlaneseq
        %v575 = vshrl.u32 %v574, 7
        %v576 = vsub.s32 0, %v575
        %v577 = vrot.slane %v572, %v576
        %v578 = vlaneseq
        %v579 = vshrl.u32 %v578, 7
        %v580 = vsub.s32 1, %v579
        %v581 = vrot.slane %v572, %v580
        %v584 = vmul.f32 %v569, %v577
        %v585 = vmul.f32 %v570, %v581
        %s586 = scalar_lea.vmem %s0, 24
        %v587 = vld [vmem:[%s586] sm:$0x3]
        %v588 = vlaneseq
        %v589 = vshrl.u32 %v588, 7
        %v590 = vsub.s32 0, %v589
        %v591 = vrot.slane %v584, %v590
        %v592 = vlaneseq
        %v593 = vshrl.u32 %v592, 7
        %v594 = vsub.s32 0, %v593
        %v595 = vrot.slane %v585, %v594
        %597 = vset.pattern.permute.xlu0 0
        %598 = vperm.xlu0 %597, %v587
        %v599 = vpop.permute.xlu0 %598
        %v601 = vmul.f32 %v591, %v599
        %v602 = vmul.f32 %v595, %v599
        %v603 = vadd.f32 %v562, %v601
        %v604 = vadd.f32 %v563, %v602
        %s605 = scalar_lea.vmem %s0, 26
        %v606 = vld [vmem:[%s605] sm:$0x3]
        %v607 = vlaneseq
        %v608 = vshrl.u32 %v607, 7
        %v609 = vsub.s32 1, %v608
        %v610 = vrot.slane %v584, %v609
        %v611 = vlaneseq
        %v612 = vshrl.u32 %v611, 7
        %v613 = vsub.s32 1, %v612
        %v614 = vrot.slane %v585, %v613
        %616 = vset.pattern.permute.xlu0 0
        %617 = vperm.xlu0 %616, %v606
        %v618 = vpop.permute.xlu0 %617
        %v620 = vmul.f32 %v610, %v618
        %v621 = vmul.f32 %v614, %v618
        %v622 = vadd.f32 %v603, %v620
        %v623 = vadd.f32 %v604, %v621
        %624 = vrot.lane.b32.xlu0 %v202, 112
        %v625 = vpop.permute.xlu0 %624
        %626 = vrot.lane.b32.xlu0 %v204, 112
        %v627 = vpop.permute.xlu0 %626
        %vm628 = vcmp.lt.s32.totalorder %v211, 112
        %v629 = vsel %vm628, %v625, %v627
        %v630 = vsel %vm628, %v627, %v625
        %s631 = scalar_lea.vmem %s2, 14
        %v632 = vld [vmem:[%s631] sm:$0x3]
        %v634 = vlaneseq
        %v635 = vshrl.u32 %v634, 7
        %v636 = vsub.s32 0, %v635
        %v637 = vrot.slane %v632, %v636
        %v638 = vlaneseq
        %v639 = vshrl.u32 %v638, 7
        %v640 = vsub.s32 1, %v639
        %v641 = vrot.slane %v632, %v640
        %v644 = vmul.f32 %v629, %v637
        %v645 = vmul.f32 %v630, %v641
        %s646 = scalar_lea.vmem %s0, 28
        %v647 = vld [vmem:[%s646] sm:$0x3]
        %v648 = vlaneseq
        %v649 = vshrl.u32 %v648, 7
        %v650 = vsub.s32 0, %v649
        %v651 = vrot.slane %v644, %v650
        %v652 = vlaneseq
        %v653 = vshrl.u32 %v652, 7
        %v654 = vsub.s32 0, %v653
        %v655 = vrot.slane %v645, %v654
        %657 = vset.pattern.permute.xlu0 0
        %658 = vperm.xlu0 %657, %v647
        %v659 = vpop.permute.xlu0 %658
        %v661 = vmul.f32 %v651, %v659
        %v662 = vmul.f32 %v655, %v659
        %v663 = vadd.f32 %v622, %v661
        %v664 = vadd.f32 %v623, %v662
        %s665 = scalar_lea.vmem %s0, 30
        %v666 = vld [vmem:[%s665] sm:$0x3]
        %v667 = vlaneseq
        %v668 = vshrl.u32 %v667, 7
        %v669 = vsub.s32 1, %v668
        %v670 = vrot.slane %v644, %v669
        %v671 = vlaneseq
        %v672 = vshrl.u32 %v671, 7
        %v673 = vsub.s32 1, %v672
        %v674 = vrot.slane %v645, %v673
        %676 = vset.pattern.permute.xlu0 0
        %677 = vperm.xlu0 %676, %v666
        %v678 = vpop.permute.xlu0 %677
        %v680 = vmul.f32 %v670, %v678
        %v681 = vmul.f32 %v674, %v678
        %v682 = vadd.f32 %v663, %v680
        %v683 = vadd.f32 %v664, %v681
        %684 = vrot.lane.b32.xlu0 %v202, 111
        %v685 = vpop.permute.xlu0 %684
        %686 = vrot.lane.b32.xlu0 %v204, 111
        %v687 = vpop.permute.xlu0 %686
        %vm688 = vcmp.lt.s32.totalorder %v211, 111
        %v689 = vsel %vm688, %v685, %v687
        %v690 = vsel %vm688, %v687, %v685
        %s691 = scalar_lea.vmem %s2, 16
        %v692 = vld [vmem:[%s691] sm:$0x3]
        %v694 = vlaneseq
        %v695 = vshrl.u32 %v694, 7
        %v696 = vsub.s32 0, %v695
        %v697 = vrot.slane %v692, %v696
        %v698 = vlaneseq
        %v699 = vshrl.u32 %v698, 7
        %v700 = vsub.s32 1, %v699
        %v701 = vrot.slane %v692, %v700
        %v704 = vmul.f32 %v689, %v697
        %v705 = vmul.f32 %v690, %v701
        %s706 = scalar_lea.vmem %s0, 32
        %v707 = vld [vmem:[%s706] sm:$0x3]
        %v708 = vlaneseq
        %v709 = vshrl.u32 %v708, 7
        %v710 = vsub.s32 0, %v709
        %v711 = vrot.slane %v704, %v710
        %v712 = vlaneseq
        %v713 = vshrl.u32 %v712, 7
        %v714 = vsub.s32 0, %v713
        %v715 = vrot.slane %v705, %v714
        %717 = vset.pattern.permute.xlu0 0
        %718 = vperm.xlu0 %717, %v707
        %v719 = vpop.permute.xlu0 %718
        %v721 = vmul.f32 %v711, %v719
        %v722 = vmul.f32 %v715, %v719
        %v723 = vadd.f32 %v682, %v721
        %v724 = vadd.f32 %v683, %v722
        %s725 = scalar_lea.vmem %s0, 34
        %v726 = vld [vmem:[%s725] sm:$0x3]
        %v727 = vlaneseq
        %v728 = vshrl.u32 %v727, 7
        %v729 = vsub.s32 1, %v728
        %v730 = vrot.slane %v704, %v729
        %v731 = vlaneseq
        %v732 = vshrl.u32 %v731, 7
        %v733 = vsub.s32 1, %v732
        %v734 = vrot.slane %v705, %v733
        %736 = vset.pattern.permute.xlu0 0
        %737 = vperm.xlu0 %736, %v726
        %v738 = vpop.permute.xlu0 %737
        %v740 = vmul.f32 %v730, %v738
        %v741 = vmul.f32 %v734, %v738
        %v742 = vadd.f32 %v723, %v740
        %v743 = vadd.f32 %v724, %v741
        %v746 = vcombine.low %v742, %v743
        %748 = vst [vmem:[%s190] sm:$0x33] %v746
        %v749 = vld [vmem:[%s195] sm:$0xcc]
        %750 = vst [vmem:[%s190] sm:$0xcc] %v749
        %s751 = sand.u32 %s115, 1
        %s752 = scalar_lea.sflag [#allocation3], %s751
        %s753 = sand.u32 %s115, 1
        %s754 = smul.addr %s753, 8
        %s755 = scalar_lea.vmem [#allocation2], %s754
        // Predicated region
        $region37: #{tpu_custom_call.1} parent=35 // pred_check
          %p756 = pneg %p125
        $region38: #{tpu_custom_call.1} parent=35 // pred_check_branch
          %758 = sbr.rel (%p756) target = $region40
        $region39: #{tpu_custom_call.1} parent=35 // pred_region
          %s760 = ssub.s32 128, 128
          %761 = vsyncadd %s752, %s760
          %s762 = smul.addr %s18, 2
          %s763 = smul.addr %s762, 64
          %s764 = scalar_lea.hbm %s4, %s763
          %s766 = sshll.u32 %s755, 4
          %s767 = int_to_ptr.vmem [resolvable:$true] %s766
          %769 = dma.vmem_to_hbm [thread:$0]  %s767, 128, %s764, %s752
        $region40: #{tpu_custom_call.1} parent=35 // pred_fallthru
          _
      $region36: #{tpu_custom_call.1} parent=5 // pred_fallthru
        _
      %p770 = scmp.le.s32.totalorder 2, %s13
      // Predicated region
      $region41: #{tpu_custom_call.1} parent=5 // pred_check
        %p771 = pneg %p770
      $region42: #{tpu_custom_call.1} parent=5 // pred_check_branch
        %773 = sbr.rel (%p771) target = $region44
      $region43: #{tpu_custom_call.1} parent=5 // pred_region
        %s774 = ssub.s32 %s13, 2
        // Predicated region
        $region45: #{tpu_custom_call.1} parent=43 // pred_check
          %p775 = pneg %p131
        $region46: #{tpu_custom_call.1} parent=43 // pred_check_branch
          %777 = sbr.rel (%p775) target = $region48
        $region47: #{tpu_custom_call.1} parent=43 // pred_region
          %s778 = sand.u32 %s116, 1
          %s779 = scalar_lea.sflag [#allocation3], %s778
          %s780 = sand.u32 %s116, 1
          %s781 = smul.addr %s780, 8
          %s782 = scalar_lea.vmem [#allocation2], %s781
          %783 = dma.done %s779, 128
        $region48: #{tpu_custom_call.1} parent=43 // pred_fallthru
          _
      $region44: #{tpu_custom_call.1} parent=5 // pred_fallthru
        _
    $region6: #{tpu_custom_call.1} parent=1 // loop_footer
      %s17 = sadd.s32 1, %s13
    $region7: #{tpu_custom_call.1} parent=1 // loop_footer_branch
      %12 = sbr.rel target = $region3
    $region8: #{tpu_custom_call.1} parent=1 // loop_exit
      _
    %784 = vsyncpa [#allocation3], 1
    %s785 = scalar_lea.sflag [#allocation3], 1
    %786 = vsyncpa %s785, 1

</llo_original>
